<compile_context>
chip_gen: v7x
topology: tpu7x:2x2x1
jax: 0.10.0
libtpu: 0.0.40
codegen_flags: <defaults>
</compile_context>

<pallas_src>
import math
from functools import partial

import jax
import jax.numpy as jnp
from jax.experimental import pallas as pl
from jax.experimental.pallas import tpu as pltpu


def _softshrink(x, lbd):
    # y = relu(x - lbd) - relu(-(x + lbd))
    return jnp.maximum(x - lbd, 0.0) - jnp.maximum(-(x + lbd), 0.0)


def _iabn_kernel(x_ref, p_ref, o_ref, *, hw, eps):
    # x_ref block: (TR, HW) in the input's native dtype (one row per (b, c)).
    # p_ref block: (TR, 8) f32 = [mu_b, var_b, thr_mu, thr_s2, w, b, 0, 0].
    x = x_ref[...].astype(jnp.float32)                      # (TR, HW)

    p = p_ref[...]                                          # (TR, 8)
    mu_b = p[:, 0:1]
    s2_b = p[:, 1:2]
    thr_mu = p[:, 2:3]
    thr_s2 = p[:, 3:4]
    w = p[:, 4:5]
    b = p[:, 5:6]

    # Fused single-pass first / second moments (f32 accumulation).
    s1 = jnp.sum(x, axis=1, keepdims=True)                  # (TR, 1)
    s2q = jnp.sum(x * x, axis=1, keepdims=True)             # (TR, 1)
    mu = s1 * (1.0 / hw)
    sigma2 = jnp.maximum((s2q - s1 * mu) * (1.0 / (hw - 1.0)), 0.0)  # unbiased

    # Soft-shrink blend of instance stats toward batch (running) stats.
    mu_adj = mu_b + _softshrink(mu - mu_b, thr_mu)
    sigma2_adj = jnp.maximum(s2_b + _softshrink(sigma2 - s2_b, thr_s2), 0.0)

    # Fold normalization + affine into one scale/shift.
    scale = jax.lax.rsqrt(sigma2_adj + eps) * w             # (TR, 1)
    shift = b - mu_adj * scale
    o_ref[...] = (x * scale + shift).astype(o_ref.dtype)


def _choose_row_tile(N, HW, itemsize, target_bytes):
    """Largest 8-multiple divisor of N whose (TR, HW) block fits target_bytes."""
    if N % 8 != 0:
        return N  # full row dim -> exempt from the sublane-divisibility rule
    cands = [d for d in range(8, N + 1, 8) if N % d == 0]
    fitting = [d for d in cands if d * HW * itemsize <= target_bytes]
    return max(fitting) if fitting else min(cands)


def instance_aware_batch_norm_2d(x, running_mean, running_var, weight, bias,
                                 k=3.0, eps=1e-5, block_target_bytes=2 << 20):
    B, C, H, W = x.shape
    HW = H * W
    if HW < 2:
        # unbiased variance (and sqrt(2/(HW-1))) is undefined for H*W == 1
        raise ValueError("InstanceAwareBatchNorm2d requires H*W >= 2")

    N = B * C
    x2 = x.reshape(N, HW)  # no dtype cast in HBM; cast happens in-kernel

    rm = running_mean.astype(jnp.float32)
    rv = running_var.astype(jnp.float32)
    thr_mu = k * jnp.sqrt((rv + eps) / HW)
    thr_s2 = k * (rv + eps) * math.sqrt(2.0 / (HW - 1))
    zeros = jnp.zeros((C,), jnp.float32)
    params_c = jnp.stack(
        [rm, rv, thr_mu, thr_s2,
         weight.astype(jnp.float32), bias.astype(jnp.float32), zeros, zeros],
        axis=1)                                            # (C, 8)
    params = jnp.broadcast_to(params_c[None], (B, C, 8)).reshape(N, 8)

    TR = _choose_row_tile(N, HW, x2.dtype.itemsize, block_target_bytes)
    # TODO(synk): if even the minimum 8-row tile exceeds VMEM (very large H*W),
    # a two-phase grid over HW (stats pass, then normalize pass) is required.

    kernel = partial(_iabn_kernel, hw=float(HW), eps=float(eps))

    out = pl.pallas_call(
        kernel,
        out_shape=jax.ShapeDtypeStruct((N, HW), x2.dtype),
        grid=(N // TR,),
        in_specs=[
            pl.BlockSpec((TR, HW), lambda i: (i, 0)),
            pl.BlockSpec((TR, 8), lambda i: (i, 0)),
        ],
        out_specs=pl.BlockSpec((TR, HW), lambda i: (i, 0)),
        compiler_params=pltpu.CompilerParams(
            dimension_semantics=("parallel",)),
    )(x2, params)

    return out.reshape(B, C, H, W)


def _reference(x, running_mean, running_var, weight, bias, k=3.0, eps=1e-5):
    # Pure-JAX reference mirroring the PyTorch eval-mode forward.
    B, C, H, W = x.shape
    hw = H * W
    xf = x.astype(jnp.float32)
    mu = jnp.mean(xf, axis=(2, 3), keepdims=True)
    sigma2 = jnp.sum((xf - mu) ** 2, axis=(2, 3), keepdims=True) / (hw - 1)
    mu_b = running_mean.reshape(1, C, 1, 1).astype(jnp.float32)
    s2_b = running_var.reshape(1, C, 1, 1).astype(jnp.float32)
    s_mu = jnp.sqrt((s2_b + eps) / hw)
    s_s2 = (s2_b + eps) * math.sqrt(2.0 / (hw - 1))
    mu_adj = mu_b + _softshrink(mu - mu_b, k * s_mu)
    s2_adj = jnp.maximum(s2_b + _softshrink(sigma2 - s2_b, k * s_s2), 0.0)
    x_n = (xf - mu_adj) * jax.lax.rsqrt(s2_adj + eps)
    return x_n * weight.reshape(1, C, 1, 1) + bias.reshape(1, C, 1, 1)


if __name__ == "__main__":
    key = jax.random.PRNGKey(0)

    # --- test 1: small f32 case (B*C = 8 -> single 8-sublane block) ---
    kx, km, kv, kw, kb = jax.random.split(key, 5)
    B, C, H, W = 2, 4, 16, 16
    x = jax.random.normal(kx, (B, C, H, W), dtype=jnp.float32) * 2.0 + 0.5
    running_mean = jax.random.normal(km, (C,), dtype=jnp.float32) * 0.1
    running_var = jax.random.uniform(kv, (C,), dtype=jnp.float32,
                                     minval=0.5, maxval=1.5)
    weight = 1.0 + 0.1 * jax.random.normal(kw, (C,), dtype=jnp.float32)
    bias = 0.1 * jax.random.normal(kb, (C,), dtype=jnp.float32)

    out = instance_aware_batch_norm_2d(x, running_mean, running_var, weight, bias)
    out = jax.block_until_ready(out)
    ref = _reference(x, running_mean, running_var, weight, bias)
    assert out.shape == (B, C, H, W)
    assert jnp.allclose(out, ref, atol=1e-4, rtol=1e-4)

    # --- test 2: bf16 input (in-kernel cast path) with a small VMEM budget
    #             forcing a multi-step row-tiled grid (N=32, TR=8) ---
    k2 = jax.random.PRNGKey(0)
    kx2, km2, kv2, kw2, kb2 = jax.random.split(k2, 5)
    B2, C2, H2, W2 = 2, 16, 24, 24
    x2 = (jax.random.normal(kx2, (B2, C2, H2, W2), dtype=jnp.float32)
          * 1.5 + 0.25).astype(jnp.bfloat16)
    rm2 = jax.random.normal(km2, (C2,), dtype=jnp.float32) * 0.1
    rv2 = jax.random.uniform(kv2, (C2,), dtype=jnp.float32, minval=0.5, maxval=1.5)
    w2 = 1.0 + 0.1 * jax.random.normal(kw2, (C2,), dtype=jnp.float32)
    b2 = 0.1 * jax.random.normal(kb2, (C2,), dtype=jnp.float32)

    out2 = instance_aware_batch_norm_2d(x2, rm2, rv2, w2, b2,
                                        block_target_bytes=16 * 1024)
    out2 = jax.block_until_ready(out2)
    assert out2.dtype == jnp.bfloat16
    ref2 = _reference(x2, rm2, rv2, w2, b2)
    assert jnp.allclose(out2.astype(jnp.float32), ref2, atol=1e-1, rtol=1e-1)

    # --- test 3: B*C not a multiple of 8 -> full-extent (exempt) row block ---
    k3 = jax.random.PRNGKey(0)
    kx3, km3, kv3, kw3, kb3 = jax.random.split(k3, 5)
    B3, C3, H3, W3 = 3, 3, 8, 8
    x3 = jax.random.normal(kx3, (B3, C3, H3, W3), dtype=jnp.float32)
    rm3 = jax.random.normal(km3, (C3,), dtype=jnp.float32) * 0.1
    rv3 = jax.random.uniform(kv3, (C3,), dtype=jnp.float32, minval=0.5, maxval=1.5)
    w3 = 1.0 + 0.1 * jax.random.normal(kw3, (C3,), dtype=jnp.float32)
    b3 = 0.1 * jax.random.normal(kb3, (C3,), dtype=jnp.float32)

    out3 = instance_aware_batch_norm_2d(x3, rm3, rv3, w3, b3)
    out3 = jax.block_until_ready(out3)
    ref3 = _reference(x3, rm3, rv3, w3, b3)
    assert jnp.allclose(out3, ref3, atol=1e-4, rtol=1e-4)

    print("KERNEL_OK")
</pallas_src>

<mosaic_0001>
module attributes {stable_mosaic.version = 11 : i64} {
  func.func @_iabn_kernel(%arg0: i32, %arg1: memref<8x256xf32, #tpu.memory_space<vmem>>, %arg2: memref<8x8xf32, #tpu.memory_space<vmem>>, %arg3: memref<8x256xf32, #tpu.memory_space<vmem>>) attributes {dimension_semantics = [#tpu.dimension_semantics<parallel>], iteration_bounds = array<i64: 1>, scalar_prefetch = 0 : i64, scratch_operands = 0 : i64, tpu.core_type = #tpu.core_type<tc>, window_params = [{transform_indices = @transform_0, window_bounds = array<i64: 8, 256>}, {transform_indices = @transform_1, window_bounds = array<i64: 8, 8>}, {transform_indices = @transform_2, window_bounds = array<i64: 8, 256>}]} {
    %c0 = arith.constant 0 : index
    %c0_0 = arith.constant 0 : index
    %0 = vector.load %arg1[%c0, %c0_0] : memref<8x256xf32, #tpu.memory_space<vmem>>, vector<8x256xf32>
    %c0_1 = arith.constant 0 : index
    %c0_2 = arith.constant 0 : index
    %1 = vector.load %arg2[%c0_1, %c0_2] : memref<8x8xf32, #tpu.memory_space<vmem>>, vector<8x8xf32>
    %2 = vector.extract_strided_slice %1 {offsets = [0, 0], sizes = [8, 1], strides = [1, 1]} : vector<8x8xf32> to vector<8x1xf32>
    %3 = vector.extract_strided_slice %1 {offsets = [0, 1], sizes = [8, 1], strides = [1, 1]} : vector<8x8xf32> to vector<8x1xf32>
    %4 = vector.extract_strided_slice %1 {offsets = [0, 2], sizes = [8, 1], strides = [1, 1]} : vector<8x8xf32> to vector<8x1xf32>
    %5 = vector.extract_strided_slice %1 {offsets = [0, 3], sizes = [8, 1], strides = [1, 1]} : vector<8x8xf32> to vector<8x1xf32>
    %6 = vector.extract_strided_slice %1 {offsets = [0, 4], sizes = [8, 1], strides = [1, 1]} : vector<8x8xf32> to vector<8x1xf32>
    %7 = vector.extract_strided_slice %1 {offsets = [0, 5], sizes = [8, 1], strides = [1, 1]} : vector<8x8xf32> to vector<8x1xf32>
    %cst = arith.constant dense<0.000000e+00> : vector<8xf32>
    %8 = vector.multi_reduction <add>, %0, %cst [1] : vector<8x256xf32> to vector<8xf32>
    %9 = vector.shape_cast %8 : vector<8xf32> to vector<8x1xf32>
    %10 = arith.mulf %0, %0 : vector<8x256xf32>
    %cst_3 = arith.constant dense<0.000000e+00> : vector<8xf32>
    %11 = vector.multi_reduction <add>, %10, %cst_3 [1] : vector<8x256xf32> to vector<8xf32>
    %12 = vector.shape_cast %11 : vector<8xf32> to vector<8x1xf32>
    %cst_4 = arith.constant 3.906250e-03 : f32
    %13 = vector.broadcast %cst_4 : f32 to vector<8x1xf32>
    %14 = arith.mulf %9, %13 : vector<8x1xf32>
    %15 = arith.mulf %9, %14 : vector<8x1xf32>
    %16 = arith.subf %12, %15 : vector<8x1xf32>
    %cst_5 = arith.constant 0.00392156886 : f32
    %17 = vector.broadcast %cst_5 : f32 to vector<8x1xf32>
    %18 = arith.mulf %16, %17 : vector<8x1xf32>
    %cst_6 = arith.constant 0.000000e+00 : f32
    %19 = vector.broadcast %cst_6 : f32 to vector<8x1xf32>
    %20 = arith.maximumf %18, %19 : vector<8x1xf32>
    %21 = arith.subf %14, %2 : vector<8x1xf32>
    %22 = arith.subf %21, %4 : vector<8x1xf32>
    %cst_7 = arith.constant 0.000000e+00 : f32
    %23 = vector.broadcast %cst_7 : f32 to vector<8x1xf32>
    %24 = arith.maximumf %22, %23 : vector<8x1xf32>
    %25 = arith.addf %21, %4 : vector<8x1xf32>
    %cst_8 = arith.constant 0.000000e+00 : f32
    %26 = vector.broadcast %cst_8 : f32 to vector<8x1xf32>
    %27 = arith.subf %26, %25 : vector<8x1xf32>
    %cst_9 = arith.constant 0.000000e+00 : f32
    %28 = vector.broadcast %cst_9 : f32 to vector<8x1xf32>
    %29 = arith.maximumf %27, %28 : vector<8x1xf32>
    %30 = arith.subf %24, %29 : vector<8x1xf32>
    %31 = arith.addf %2, %30 : vector<8x1xf32>
    %32 = arith.subf %20, %3 : vector<8x1xf32>
    %33 = arith.subf %32, %5 : vector<8x1xf32>
    %cst_10 = arith.constant 0.000000e+00 : f32
    %34 = vector.broadcast %cst_10 : f32 to vector<8x1xf32>
    %35 = arith.maximumf %33, %34 : vector<8x1xf32>
    %36 = arith.addf %32, %5 : vector<8x1xf32>
    %cst_11 = arith.constant 0.000000e+00 : f32
    %37 = vector.broadcast %cst_11 : f32 to vector<8x1xf32>
    %38 = arith.subf %37, %36 : vector<8x1xf32>
    %cst_12 = arith.constant 0.000000e+00 : f32
    %39 = vector.broadcast %cst_12 : f32 to vector<8x1xf32>
    %40 = arith.maximumf %38, %39 : vector<8x1xf32>
    %41 = arith.subf %35, %40 : vector<8x1xf32>
    %42 = arith.addf %3, %41 : vector<8x1xf32>
    %cst_13 = arith.constant 0.000000e+00 : f32
    %43 = vector.broadcast %cst_13 : f32 to vector<8x1xf32>
    %44 = arith.maximumf %42, %43 : vector<8x1xf32>
    %cst_14 = arith.constant 9.99999974E-6 : f32
    %45 = vector.broadcast %cst_14 : f32 to vector<8x1xf32>
    %46 = arith.addf %44, %45 : vector<8x1xf32>
    %47 = math.rsqrt %46 : vector<8x1xf32>
    %48 = arith.mulf %47, %6 : vector<8x1xf32>
    %49 = arith.mulf %31, %48 : vector<8x1xf32>
    %50 = arith.subf %7, %49 : vector<8x1xf32>
    %51 = vector.broadcast %48 : vector<8x1xf32> to vector<8x256xf32>
    %52 = arith.mulf %0, %51 : vector<8x256xf32>
    %53 = vector.broadcast %50 : vector<8x1xf32> to vector<8x256xf32>
    %54 = arith.addf %52, %53 : vector<8x256xf32>
    %c0_15 = arith.constant 0 : index
    %c0_16 = arith.constant 0 : index
    %55 = vector.load %arg3[%c0_15, %c0_16] : memref<8x256xf32, #tpu.memory_space<vmem>>, vector<8x256xf32>
    tpu.vector_store %arg3[%c0_15, %c0_16], %54 {strides = array<i32>} : memref<8x256xf32, #tpu.memory_space<vmem>>, vector<8x256xf32>,
    return
  }
  func.func @transform_0(%arg0: i32) -> (i32, i32) {
    %c0_i32 = arith.constant 0 : i32
    %c0_i32_0 = arith.constant 0 : i32
    return %arg0, %c0_i32 : i32, i32
  }
  func.func @transform_1(%arg0: i32) -> (i32, i32) {
    %c0_i32 = arith.constant 0 : i32
    %c0_i32_0 = arith.constant 0 : i32
    return %arg0, %c0_i32 : i32, i32
  }
  func.func @transform_2(%arg0: i32) -> (i32, i32) {
    %c0_i32 = arith.constant 0 : i32
    %c0_i32_0 = arith.constant 0 : i32
    return %arg0, %c0_i32 : i32, i32
  }
}

</mosaic_0001>

<llo_original>
// kernel: tpu_custom_call.1
$region0: #{tpu_custom_call.1}
  #allocation0 [shape = 'u32[]', space=smem, size = 0x4, offset = 0x4, fixed_abs, tag = 'smem constant byte address 0x4 - core index']
  #allocation1 [shape = 'u32[144,128]{1,0:T(1,128)}', space=vmem, size = 0x12000, scoped, tag = 'internal scratch']
  %s0 = inlined_call_operand.hbm [shape: f32[8,256], index: 0, kind: input, shape index: {}]
  %s1 = inlined_call_operand.hbm [shape: f32[8,8], index: 1, kind: input, shape index: {}]
  %s2 = inlined_call_operand.hbm [shape: f32[8,256], index: 2, kind: output, shape index: {}]
  %s3 = sld [smem:[#allocation0]]
  $region26: #{tpu_custom_call.1} parent=0
    _
  %s5 = ssub.s32 1, %s3
  %s6 = scalar_select 0, %s5, %s3
  $region1: #{tpu_custom_call.1} parent=0
    #allocation2 [shape = 'u8[8192]{0}', space=vmem, size = 0x2000, scoped, tag = 'input window, operand 0, single buffered']
    #allocation3 [shape = 's32[1]{0}', space=sflag, size = 0x4, scoped, tag = 'scoped memory for tpu_custom_call.1']
    #allocation4 [shape = 's32[1]{0}', space=sflag, size = 0x4, scoped, tag = 'scoped memory for tpu_custom_call.1']
    #allocation5 [shape = 'u8[4096]{0}', space=vmem, size = 0x1000, scoped, tag = 'input window, operand 1, single buffered']
    #allocation6 [shape = 's32[1]{0}', space=sflag, size = 0x4, scoped, tag = 'scoped memory for tpu_custom_call.1']
    #allocation7 [shape = 'u8[8192]{0}', space=vmem, size = 0x2000, scoped, tag = 'output window, operand 0, single buffered']
    %7 = vsyncpa [#allocation3], 0
    %8 = vsyncpa [#allocation6], 0
    %9 = vsyncpa [#allocation4], 0
    // Predicated region
    $region2: #{tpu_custom_call.1} parent=1 // pred_check
      _
    $region3: #{tpu_custom_call.1} parent=1 // pred_check_branch
      %11 = sbr.rel (0) target = $region5
    $region4: #{tpu_custom_call.1} parent=1 // pred_region
      %s13 = ssub.s32 256, 256
      %14 = vsyncadd [#allocation3], %s13
      %s16 = sshll.u32 [#allocation2], 4
      %s17 = int_to_ptr.vmem [resolvable:$true] %s16
      %19 = dma.hbm_to_vmem [thread:$0]  %s0, 256, %s17, [#allocation3]
    $region5: #{tpu_custom_call.1} parent=1 // pred_fallthru
      _
    // Predicated region
    $region6: #{tpu_custom_call.1} parent=1 // pred_check
      _
    $region7: #{tpu_custom_call.1} parent=1 // pred_check_branch
      %21 = sbr.rel (0) target = $region9
    $region8: #{tpu_custom_call.1} parent=1 // pred_region
      %s23 = ssub.s32 128, 128
      %24 = vsyncadd [#allocation6], %s23
      %s26 = sshll.u32 [#allocation5], 4
      %s27 = int_to_ptr.vmem [resolvable:$true] %s26
      %29 = dma.hbm_to_vmem [thread:$0]  %s1, 128, %s27, [#allocation6]
    $region9: #{tpu_custom_call.1} parent=1 // pred_fallthru
      _
    // Predicated region
    $region10: #{tpu_custom_call.1} parent=1 // pred_check
      _
    $region11: #{tpu_custom_call.1} parent=1 // pred_check_branch
      %31 = sbr.rel (0) target = $region13
    $region12: #{tpu_custom_call.1} parent=1 // pred_region
      %32 = dma.done [#allocation3], 256
    $region13: #{tpu_custom_call.1} parent=1 // pred_fallthru
      _
    // Predicated region
    $region14: #{tpu_custom_call.1} parent=1 // pred_check
      _
    $region15: #{tpu_custom_call.1} parent=1 // pred_check_branch
      %34 = sbr.rel (0) target = $region17
    $region16: #{tpu_custom_call.1} parent=1 // pred_region
      %35 = dma.done [#allocation6], 128
    $region17: #{tpu_custom_call.1} parent=1 // pred_fallthru
      _
    %v36 = vld [vmem:[#allocation2] sm:$0xff]
    %v37 = vld [vmem:[#allocation2 + $0x8] sm:$0xff]
    %v38 = vld [vmem:[#allocation5] sm:$0xff]
    %v39 = vadd.f32 %v36, %v37
    %40 = vadd.xlane.f32.xlu0 %v39
    %v41 = vpop.xlane.xlu0 %40
    %v42 = vmul.f32 %v36, %v36
    %v43 = vmul.f32 %v37, %v37
    %v44 = vadd.f32 %v42, %v43
    %45 = vadd.xlane.f32.xlu0 %v44
    %v46 = vpop.xlane.xlu0 %45
    %v47 = vmul.f32 %v41, 0.00390625
    %v48 = vmul.f32 %v41, %v47
    %v49 = vsub.f32 %v46, %v48
    %v50 = vmul.f32 %v49, 0.003921569
    %v51 = vmax.f32 %v50, 0.0
    %v52 = vsub.f32 %v47, %v38
    %54 = vrot.lane.b32.xlu0 %v38, 126
    %v55 = vpop.permute.xlu0 %54
    %v57 = vsub.f32 %v52, %v55
    %v58 = vmax.f32 %v57, 0.0
    %v59 = vadd.f32 %v52, %v55
    %v60 = vsub.f32 0.0, %v59
    %v61 = vmax.f32 %v60, 0.0
    %v62 = vsub.f32 %v58, %v61
    %v63 = vadd.f32 %v38, %v62
    %v64 = vsub.f32 %v51, %v38
    %v65 = vsub.f32 %v64, %v55
    %v66 = vmax.f32 %v65, 0.0
    %v67 = vadd.f32 %v64, %v55
    %v68 = vsub.f32 0.0, %v67
    %v69 = vmax.f32 %v68, 0.0
    %v70 = vsub.f32 %v66, %v69
    %v71 = vadd.f32 %v38, %v70
    %v72 = vmax.f32 %v71, 0.0
    %v73 = vadd.f32 %v72, 1e-05
    %v74 = vrsqrt.pop %v73
    %75 = vrot.lane.b32.xlu0 %v38, 125
    %v76 = vpop.permute.xlu0 %75
    %v78 = vmul.f32 %v74, %v76
    %80 = vrot.lane.b32.xlu0 %v78, 127
    %v81 = vpop.permute.xlu0 %80
    %v83 = vmul.f32 %v63, %v81
    %85 = vrot.lane.b32.xlu0 %v83, 5
    %v86 = vpop.permute.xlu0 %85
    %v88 = vsub.f32 %v38, %v86
    %89 = vset.pattern.permute.xlu0 1
    %90 = vperm.xlu0 %89, %v78
    %v91 = vpop.permute.xlu0 %90
    %v93 = vmul.f32 %v36, %v91
    %v94 = vmul.f32 %v37, %v91
    %96 = vset.pattern.permute.xlu0 5
    %97 = vperm.xlu0 %96, %v88
    %v98 = vpop.permute.xlu0 %97
    %v100 = vadd.f32 %v93, %v98
    %v101 = vadd.f32 %v94, %v98
    %102 = vst [vmem:[#allocation7] sm:$0xff] %v100
    %103 = vst [vmem:[#allocation7 + $0x8] sm:$0xff] %v101
    // Predicated region
    $region18: #{tpu_custom_call.1} parent=1 // pred_check
      _
    $region19: #{tpu_custom_call.1} parent=1 // pred_check_branch
      %105 = sbr.rel (0) target = $region21
    $region20: #{tpu_custom_call.1} parent=1 // pred_region
      %s107 = ssub.s32 256, 256
      %108 = vsyncadd [#allocation4], %s107
      %s110 = sshll.u32 [#allocation7], 4
      %s111 = int_to_ptr.vmem [resolvable:$true] %s110
      %113 = dma.vmem_to_hbm [thread:$0]  %s111, 256, %s2, [#allocation4]
    $region21: #{tpu_custom_call.1} parent=1 // pred_fallthru
      _
    // Predicated region
    $region22: #{tpu_custom_call.1} parent=1 // pred_check
      _
    $region23: #{tpu_custom_call.1} parent=1 // pred_check_branch
      %115 = sbr.rel (0) target = $region25
    $region24: #{tpu_custom_call.1} parent=1 // pred_region
      %116 = dma.done [#allocation4], 256
    $region25: #{tpu_custom_call.1} parent=1 // pred_fallthru
      _
    %117 = vsyncpa [#allocation3], 1
    %118 = vsyncpa [#allocation6], 1
    %119 = vsyncpa [#allocation4], 1

</llo_original>
